<compile_context>
chip_gen: v5e
topology: v5e:2x2
jax: 0.10.0
libtpu: 0.0.40
codegen_flags: <defaults>
</compile_context>

<pallas_src>
import functools

import jax
import jax.numpy as jnp
from jax import lax
from jax.experimental import pallas as pl
from jax.experimental.pallas import tpu as pltpu


def _dynamic_lif_kernel(x_ref, w1_ref, b1_ref, w2_ref, b2_ref, out_ref,
                        mem_ref, tau_ref, *, thresh, t_chunk, t_total, unroll):
    # x_ref:   (tb, Tc, C, HW)  input chunk (native dtype)
    # w1_ref:  (C, hid)         fc1 weight, pre-transposed, 1/HW pre-folded
    # b1_ref:  (1, hid)
    # w2_ref:  (hid, 1)         fc2 weight, pre-transposed
    # b2_ref:  (1, 1)
    # out_ref: (tb, Tc, C, HW)  spikes (bf16 or int8, exactly 0/1)
    # mem_ref: (tb, C, HW)      membrane potential, persists across T chunks
    # tau_ref: (tb, 1, 1)       dynamic decay, persists across T chunks
    t_blk = pl.program_id(1)

    @pl.when(t_blk == 0)
    def _():
        mem_ref[...] = jnp.zeros_like(mem_ref)
        tau_ref[...] = jnp.full_like(tau_ref, 0.5)  # initial scalar tau

    # Hoist weight loads out of the timestep loop.
    w1 = w1_ref[...]
    b1 = b1_ref[...]
    w2 = w2_ref[...]
    b2 = b2_ref[...]

    needs_mask = (t_total % t_chunk) != 0          # static (compile-time)
    t_base = t_blk * t_chunk

    def step(tc, carry):
        mem, tau = carry
        x_t = x_ref[:, tc].astype(jnp.float32)     # (tb, C, HW)
        if needs_mask:
            # Last T block may be partial: zero the out-of-range steps so
            # mem/tau stay finite; their out stores are clipped by Pallas.
            x_t = jnp.where(t_base + tc < t_total, x_t, 0.0)

        # mem = mem * tau + x[:, t]
        mem = mem * tau + x_t

        # tau for the NEXT step = sigmoid(fc2(relu(fc1(mean_{H,W}(mem)))))
        # (1/HW is folded into w1 host-side, so a plain lane-sum suffices)
        x_sum = jnp.sum(mem, axis=-1)                              # (tb, C)
        embed = jnp.dot(x_sum, w1,
                        preferred_element_type=jnp.float32) + b1   # (tb, hid)
        embed = jnp.maximum(embed, 0.0)                            # ReLU
        logit = jnp.dot(embed, w2,
                        preferred_element_type=jnp.float32) + b2   # (tb, 1)
        tau = jax.nn.sigmoid(logit).reshape(logit.shape[0], 1, 1)

        # spike = (mem - thresh > 0); hard reset mem where it spiked.
        p = mem > thresh
        out_ref[:, tc] = p.astype(out_ref.dtype)
        mem = jnp.where(p, 0.0, mem)
        return mem, tau

    mem, tau = lax.fori_loop(0, t_chunk, step,
                             (mem_ref[...], tau_ref[...]),
                             unroll=unroll)
    mem_ref[...] = mem
    tau_ref[...] = tau


def _vmem_capacity_bytes():
    try:
        info = pltpu.get_tpu_info()
        cap = int(getattr(info, "vmem_capacity_bytes", 0))
        if cap > 0:
            return cap
    except Exception:
        pass
    return 64 * 1024 * 1024  # conservative fallback (v7x per-TensorCore VMEM)


def _largest_divisor_leq(n, cap):
    cap = max(1, min(n, cap))
    for d in range(cap, 0, -1):
        if n % d == 0:
            return d
    return 1


def dynamic_lif_forward(x, w1, b1, w2, b2, thresh=1.0,
                        t_chunk=None, b_tile=None, out_dtype=jnp.bfloat16):
    """x: (B, T, C, H, W); w1: (hid, C); b1: (hid,); w2: (1, hid); b2: (1,).

    Returns spikes of shape (B, T, C, H, W) in `out_dtype` (exactly 0/1;
    bf16 default, int8 supported for half the output HBM traffic).
    x is read in its native dtype (pass bf16 to halve the input stream).
    """
    B, T, C, H, W = x.shape
    HW = H * W
    hid = w1.shape[0]

    # --- layout: flatten H,W onto the lane axis; no pad / no transpose -----
    x_k = x.reshape(B, T, C, HW)
    w1t = jnp.asarray(w1, jnp.float32).T * (1.0 / HW)     # (C, hid), mean folded
    b1r = jnp.asarray(b1, jnp.float32).reshape(1, hid)    # (1, hid)
    w2t = jnp.asarray(w2, jnp.float32).T                  # (hid, 1)
    b2r = jnp.asarray(b2, jnp.float32).reshape(1, 1)      # (1, 1)

    # --- per-generation VMEM budget -> tile sizes ---------------------------
    vmem_cap = _vmem_capacity_bytes()
    # ~96 MiB on v5e/v6e (128 MiB physical), ~48 MiB on v7x (64 MiB per TC).
    vmem_limit = int(min(vmem_cap * 3 // 4, vmem_cap - (16 << 20)))
    vmem_limit = max(vmem_limit, 32 << 20)

    if b_tile is None:
        # >= 2 batch blocks whenever B > 1 so v7x's two TensorCores both get
        # work; keep b_tile modest (t_chunk is the preferred DMA-size lever).
        b_cap = 1 if B == 1 else min(8, B // 2)
        b_tile = _largest_divisor_leq(B, b_cap)
    assert B % b_tile == 0, (B, b_tile)

    x_bytes = jnp.dtype(x_k.dtype).itemsize
    o_bytes = jnp.dtype(out_dtype).itemsize
    slab = C * HW
    tile_budget = vmem_limit - (4 << 20)                  # headroom: weights/compiler scratch
    per_t = 2 * b_tile * slab * (x_bytes + o_bytes)       # double-buffered in + out blocks
    fixed = b_tile * slab * 4                             # persistent mem scratch
    if t_chunk is None:
        t_chunk = (tile_budget - fixed) // per_t
    t_chunk = int(max(1, min(T, t_chunk)))
    n_tblk = pl.cdiv(T, t_chunk)                          # partial last block allowed

    kernel = functools.partial(
        _dynamic_lif_kernel, thresh=float(thresh), t_chunk=t_chunk,
        t_total=T, unroll=max(1, min(4, t_chunk)))

    out = pl.pallas_call(
        kernel,
        out_shape=jax.ShapeDtypeStruct((B, T, C, HW), out_dtype),
        grid_spec=pltpu.PrefetchScalarGridSpec(
            num_scalar_prefetch=0,
            grid=(B // b_tile, n_tblk),                   # T innermost (sequential)
            in_specs=[
                pl.BlockSpec((b_tile, t_chunk, C, HW), lambda b, t: (b, t, 0, 0)),
                pl.BlockSpec((C, hid), lambda b, t: (0, 0)),
                pl.BlockSpec((1, hid), lambda b, t: (0, 0)),
                pl.BlockSpec((hid, 1), lambda b, t: (0, 0)),
                pl.BlockSpec((1, 1), lambda b, t: (0, 0)),
            ],
            out_specs=pl.BlockSpec((b_tile, t_chunk, C, HW),
                                   lambda b, t: (b, t, 0, 0)),
            scratch_shapes=[
                pltpu.VMEM((b_tile, C, HW), jnp.float32),   # mem
                pltpu.VMEM((b_tile, 1, 1), jnp.float32),    # tau
            ],
        ),
        compiler_params=pltpu.CompilerParams(
            # batch blocks are independent (v7x megacore shards them);
            # the T axis carries mem/tau -> must stay sequential.
            dimension_semantics=("parallel", "arbitrary"),
            vmem_limit_bytes=vmem_limit,
        ),
    )(x_k, w1t, b1r, w2t, b2r)

    return out.reshape(B, T, C, H, W)


def dynamic_lif_reference(x, w1, b1, w2, b2, thresh=1.0):
    """Pure-JAX reference mirroring the PyTorch forward (f32 matmuls)."""
    B, T, C, H, W = x.shape
    hi = lax.Precision.HIGHEST
    tau = jnp.full((B, 1, 1, 1), 0.5, jnp.float32)
    mem = jnp.zeros((B, C, H, W), jnp.float32)
    spikes = []
    for t in range(T):
        mem = mem * tau + x[:, t].astype(jnp.float32)
        x_mean = jnp.mean(mem, axis=(-1, -2))                          # (B, C)
        embed = jnp.maximum(jnp.dot(x_mean, w1.T, precision=hi) + b1, 0.0)
        lifp = jax.nn.sigmoid(jnp.dot(embed, w2.T, precision=hi) + b2)  # (B, 1)
        tau = lifp.reshape(B, 1, 1, 1)
        spike = ((mem - thresh) > 0.0).astype(jnp.float32)
        mem = (1.0 - spike) * mem
        spikes.append(spike)
    return jnp.stack(spikes, axis=1)


if __name__ == "__main__":
    def run_case(B, T, C, H, W, reduction, key, **kw):
        hid = max(1, C // reduction)
        k_x, k_w1, k_b1, k_w2, k_b2 = jax.random.split(key, 5)
        x = jax.random.normal(k_x, (B, T, C, H, W), jnp.float32)
        # Deterministic Linear-layer init (PyTorch-style uniform bounds).
        bound1 = 1.0 / (C ** 0.5)
        w1 = jax.random.uniform(k_w1, (hid, C), jnp.float32, -bound1, bound1)
        b1 = jax.random.uniform(k_b1, (hid,), jnp.float32, -bound1, bound1)
        bound2 = 1.0 / (hid ** 0.5)
        w2 = jax.random.uniform(k_w2, (1, hid), jnp.float32, -bound2, bound2)
        b2 = jax.random.uniform(k_b2, (1,), jnp.float32, -bound2, bound2)

        out = jax.block_until_ready(
            dynamic_lif_forward(x, w1, b1, w2, b2, thresh=1.0, **kw))
        ref = dynamic_lif_reference(x, w1, b1, w2, b2, thresh=1.0)
        assert out.shape == (B, T, C, H, W), out.shape
        assert bool(jnp.array_equal(out.astype(jnp.float32), ref)), \
            "mismatch vs reference"

    key = jax.random.PRNGKey(0)
    k1, k2, k3 = jax.random.split(key, 3)

    # Non-divisor t_chunk: grid = 2 batch blocks x cdiv(8,3)=3 T blocks (last
    # one partial) -> exercises mem/tau carry across chunks, re-init at t==0,
    # and the validity mask for the partial chunk.
    run_case(2, 8, 16, 16, 16, 4, k1, b_tile=1, t_chunk=3)
    # HW = 144 (not a multiple of 128): no host-side pad/slice, masked stores.
    run_case(2, 8, 16, 12, 12, 4, k2)
    # int8 spike output (lossless 0/1, half the output HBM traffic).
    run_case(2, 8, 16, 16, 16, 4, k3, out_dtype=jnp.int8)

    print("KERNEL_OK")
</pallas_src>

<mosaic_0001>
module attributes {stable_mosaic.version = 11 : i64} {
  func.func @_dynamic_lif_kernel(%arg0: i32, %arg1: i32, %arg2: memref<1x3x16x256xf32, #tpu.memory_space<vmem>>, %arg3: memref<16x4xf32, #tpu.memory_space<vmem>>, %arg4: memref<1x4xf32, #tpu.memory_space<vmem>>, %arg5: memref<4x1xf32, #tpu.memory_space<vmem>>, %arg6: memref<1x1xf32, #tpu.memory_space<vmem>>, %arg7: memref<1x3x16x256xbf16, #tpu.memory_space<vmem>>, %arg8: memref<1x16x256xf32, #tpu.memory_space<vmem>>, %arg9: memref<1x1x1xf32, #tpu.memory_space<vmem>>) attributes {dimension_semantics = [#tpu.dimension_semantics<parallel>, #tpu.dimension_semantics<arbitrary>], iteration_bounds = array<i64: 2, 3>, scalar_prefetch = 0 : i64, scratch_operands = 2 : i64, tpu.core_type = #tpu.core_type<tc>, window_params = [{transform_indices = @transform_0, window_bounds = array<i64: 1, 3, 16, 256>}, {pipeline_mode = #tpu.pipeline_mode<synchronous>, transform_indices = @transform_1, window_bounds = array<i64: 16, 4>}, {pipeline_mode = #tpu.pipeline_mode<synchronous>, transform_indices = @transform_2, window_bounds = array<i64: 1, 4>}, {pipeline_mode = #tpu.pipeline_mode<synchronous>, transform_indices = @transform_3, window_bounds = array<i64: 4, 1>}, {pipeline_mode = #tpu.pipeline_mode<synchronous>, transform_indices = @transform_4, window_bounds = array<i64: 1, 1>}, {transform_indices = @transform_5, window_bounds = array<i64: 1, 3, 16, 256>}]} {
    %c0_i32 = arith.constant 0 : i32
    %0 = arith.cmpi eq, %arg1, %c0_i32 : i32
    %1 = arith.extui %0 : i1 to i32
    %c0_i32_0 = arith.constant 0 : i32
    %2 = arith.cmpi ne, %1, %c0_i32_0 : i32
    scf.if %2 {
      %cst_65 = arith.constant 0.000000e+00 : f32
      %114 = vector.broadcast %cst_65 : f32 to vector<1x16x256xf32>
      %c0_66 = arith.constant 0 : index
      %c0_67 = arith.constant 0 : index
      %c0_68 = arith.constant 0 : index
      %115 = vector.load %arg8[%c0_66, %c0_67, %c0_68] : memref<1x16x256xf32, #tpu.memory_space<vmem>>, vector<1x16x256xf32>
      tpu.vector_store %arg8[%c0_66, %c0_67, %c0_68], %114 {strides = array<i32>} : memref<1x16x256xf32, #tpu.memory_space<vmem>>, vector<1x16x256xf32>,
      %cst_69 = arith.constant 5.000000e-01 : f32
      %116 = vector.broadcast %cst_69 : f32 to vector<1x1x1xf32>
      %c0_70 = arith.constant 0 : index
      %c0_71 = arith.constant 0 : index
      %c0_72 = arith.constant 0 : index
      %117 = vector.load %arg9[%c0_70, %c0_71, %c0_72] : memref<1x1x1xf32, #tpu.memory_space<vmem>>, vector<1x1x1xf32>
      tpu.vector_store %arg9[%c0_70, %c0_71, %c0_72], %116 {strides = array<i32>} : memref<1x1x1xf32, #tpu.memory_space<vmem>>, vector<1x1x1xf32>,
    } else {
    }
    %c0 = arith.constant 0 : index
    %c0_1 = arith.constant 0 : index
    %3 = vector.load %arg3[%c0, %c0_1] : memref<16x4xf32, #tpu.memory_space<vmem>>, vector<16x4xf32>
    %c0_2 = arith.constant 0 : index
    %c0_3 = arith.constant 0 : index
    %4 = vector.load %arg4[%c0_2, %c0_3] : memref<1x4xf32, #tpu.memory_space<vmem>>, vector<1x4xf32>
    %c0_4 = arith.constant 0 : index
    %c0_5 = arith.constant 0 : index
    %5 = vector.load %arg5[%c0_4, %c0_5] : memref<4x1xf32, #tpu.memory_space<vmem>>, vector<4x1xf32>
    %c0_6 = arith.constant 0 : index
    %c0_7 = arith.constant 0 : index
    %6 = vector.load %arg6[%c0_6, %c0_7] : memref<1x1xf32, #tpu.memory_space<vmem>>, vector<1x1xf32>
    %c3_i32 = arith.constant 3 : i32
    %7 = arith.muli %arg1, %c3_i32 : i32
    %c0_8 = arith.constant 0 : index
    %c0_9 = arith.constant 0 : index
    %c0_10 = arith.constant 0 : index
    %8 = vector.load %arg8[%c0_8, %c0_9, %c0_10] : memref<1x16x256xf32, #tpu.memory_space<vmem>>, vector<1x16x256xf32>
    %c0_11 = arith.constant 0 : index
    %c0_12 = arith.constant 0 : index
    %c0_13 = arith.constant 0 : index
    %9 = vector.load %arg9[%c0_11, %c0_12, %c0_13] : memref<1x1x1xf32, #tpu.memory_space<vmem>>, vector<1x1x1xf32>
    %c0_i32_14 = arith.constant 0 : i32
    %c0_15 = arith.constant 0 : index
    %10 = arith.index_cast %c0_i32_14 : i32 to index
    %c0_16 = arith.constant 0 : index
    %c0_17 = arith.constant 0 : index
    %11 = vector.load %arg2[%c0_15, %10, %c0_16, %c0_17] : memref<1x3x16x256xf32, #tpu.memory_space<vmem>>, vector<1x1x16x256xf32>
    %12 = vector.shape_cast %11 : vector<1x1x16x256xf32> to vector<1x16x256xf32>
    %13 = arith.addi %7, %c0_i32_14 : i32
    %c8_i32 = arith.constant 8 : i32
    %14 = arith.cmpi slt, %13, %c8_i32 : i32
    %cst = arith.constant 0.000000e+00 : f32
    %15 = vector.broadcast %cst : f32 to vector<1x16x256xf32>
    %16 = arith.select %14, %12, %15 : vector<1x16x256xf32>
    %17 = vector.broadcast %9 : vector<1x1x1xf32> to vector<1x16x256xf32>
    %18 = arith.mulf %8, %17 : vector<1x16x256xf32>
    %19 = arith.addf %18, %16 : vector<1x16x256xf32>
    %cst_18 = arith.constant dense<0.000000e+00> : vector<1x16xf32>
    %20 = vector.multi_reduction <add>, %19, %cst_18 [2] : vector<1x16x256xf32> to vector<1x16xf32>
    %cst_19 = arith.constant dense<0.000000e+00> : vector<1x4xf32>
    %21 = tpu.matmul %20, %3, %cst_19 {dimension_numbers = #tpu.dot_dimension_numbers<[1], [0], [0], [1], [0, 0, 1, 1], [], []>} : vector<1x16xf32>, vector<16x4xf32>, vector<1x4xf32> -> vector<1x4xf32>
    %22 = arith.addf %21, %4 : vector<1x4xf32>
    %cst_20 = arith.constant 0.000000e+00 : f32
    %23 = vector.broadcast %cst_20 : f32 to vector<1x4xf32>
    %24 = arith.maximumf %22, %23 : vector<1x4xf32>
    %cst_21 = arith.constant dense<0.000000e+00> : vector<1x1xf32>
    %25 = tpu.matmul %24, %5, %cst_21 {dimension_numbers = #tpu.dot_dimension_numbers<[1], [0], [0], [1], [0, 0, 1, 1], [], []>} : vector<1x4xf32>, vector<4x1xf32>, vector<1x1xf32> -> vector<1x1xf32>
    %26 = arith.addf %25, %6 : vector<1x1xf32>
    %27 = arith.negf %26 : vector<1x1xf32>
    %28 = math.exp %27 : vector<1x1xf32>
    %cst_22 = arith.constant 1.000000e+00 : f32
    %29 = vector.broadcast %cst_22 : f32 to vector<1x1xf32>
    %30 = arith.addf %29, %28 : vector<1x1xf32>
    %31 = arith.divf %29, %30 : vector<1x1xf32>
    %32 = vector.shape_cast %31 : vector<1x1xf32> to vector<1x1x1xf32>
    %cst_23 = arith.constant 1.000000e+00 : f32
    %33 = vector.broadcast %cst_23 : f32 to vector<1x16x256xf32>
    %34 = arith.cmpf ogt, %19, %33 : vector<1x16x256xf32>
    %35 = arith.extui %34 : vector<1x16x256xi1> to vector<1x16x256xi32>
    %36 = arith.sitofp %35 : vector<1x16x256xi32> to vector<1x16x256xf32>
    %37 = arith.truncf %36 : vector<1x16x256xf32> to vector<1x16x256xbf16>
    %c0_24 = arith.constant 0 : index
    %38 = arith.index_cast %c0_i32_14 : i32 to index
    %c0_25 = arith.constant 0 : index
    %c0_26 = arith.constant 0 : index
    %39 = vector.load %arg7[%c0_24, %38, %c0_25, %c0_26] : memref<1x3x16x256xbf16, #tpu.memory_space<vmem>>, vector<1x1x16x256xbf16>
    %40 = vector.shape_cast %39 : vector<1x1x16x256xbf16> to vector<1x16x256xbf16>
    %41 = vector.shape_cast %37 : vector<1x16x256xbf16> to vector<1x1x16x256xbf16>
    tpu.vector_store %arg7[%c0_24, %38, %c0_25, %c0_26], %41 {strides = array<i32>} : memref<1x3x16x256xbf16, #tpu.memory_space<vmem>>, vector<1x1x16x256xbf16>,
    %cst_27 = arith.constant 0.000000e+00 : f32
    %42 = vector.broadcast %cst_27 : f32 to vector<1x16x256xf32>
    %43 = arith.select %34, %42, %19 : vector<1x16x256xi1>, vector<1x16x256xf32>
    %c1_i32 = arith.constant 1 : i32
    %c0_28 = arith.constant 0 : index
    %44 = arith.index_cast %c1_i32 : i32 to index
    %c0_29 = arith.constant 0 : index
    %c0_30 = arith.constant 0 : index
    %45 = vector.load %arg2[%c0_28, %44, %c0_29, %c0_30] : memref<1x3x16x256xf32, #tpu.memory_space<vmem>>, vector<1x1x16x256xf32>
    %46 = vector.shape_cast %45 : vector<1x1x16x256xf32> to vector<1x16x256xf32>
    %47 = arith.addi %7, %c1_i32 : i32
    %c8_i32_31 = arith.constant 8 : i32
    %48 = arith.cmpi slt, %47, %c8_i32_31 : i32
    %cst_32 = arith.constant 0.000000e+00 : f32
    %49 = vector.broadcast %cst_32 : f32 to vector<1x16x256xf32>
    %50 = arith.select %48, %46, %49 : vector<1x16x256xf32>
    %51 = vector.broadcast %32 : vector<1x1x1xf32> to vector<1x16x256xf32>
    %52 = arith.mulf %43, %51 : vector<1x16x256xf32>
    %53 = arith.addf %52, %50 : vector<1x16x256xf32>
    %cst_33 = arith.constant dense<0.000000e+00> : vector<1x16xf32>
    %54 = vector.multi_reduction <add>, %53, %cst_33 [2] : vector<1x16x256xf32> to vector<1x16xf32>
    %cst_34 = arith.constant dense<0.000000e+00> : vector<1x4xf32>
    %55 = tpu.matmul %54, %3, %cst_34 {dimension_numbers = #tpu.dot_dimension_numbers<[1], [0], [0], [1], [0, 0, 1, 1], [], []>} : vector<1x16xf32>, vector<16x4xf32>, vector<1x4xf32> -> vector<1x4xf32>
    %56 = arith.addf %55, %4 : vector<1x4xf32>
    %cst_35 = arith.constant 0.000000e+00 : f32
    %57 = vector.broadcast %cst_35 : f32 to vector<1x4xf32>
    %58 = arith.maximumf %56, %57 : vector<1x4xf32>
    %cst_36 = arith.constant dense<0.000000e+00> : vector<1x1xf32>
    %59 = tpu.matmul %58, %5, %cst_36 {dimension_numbers = #tpu.dot_dimension_numbers<[1], [0], [0], [1], [0, 0, 1, 1], [], []>} : vector<1x4xf32>, vector<4x1xf32>, vector<1x1xf32> -> vector<1x1xf32>
    %60 = arith.addf %59, %6 : vector<1x1xf32>
    %61 = arith.negf %60 : vector<1x1xf32>
    %62 = math.exp %61 : vector<1x1xf32>
    %cst_37 = arith.constant 1.000000e+00 : f32
    %63 = vector.broadcast %cst_37 : f32 to vector<1x1xf32>
    %64 = arith.addf %63, %62 : vector<1x1xf32>
    %65 = arith.divf %63, %64 : vector<1x1xf32>
    %66 = vector.shape_cast %65 : vector<1x1xf32> to vector<1x1x1xf32>
    %cst_38 = arith.constant 1.000000e+00 : f32
    %67 = vector.broadcast %cst_38 : f32 to vector<1x16x256xf32>
    %68 = arith.cmpf ogt, %53, %67 : vector<1x16x256xf32>
    %69 = arith.extui %68 : vector<1x16x256xi1> to vector<1x16x256xi32>
    %70 = arith.sitofp %69 : vector<1x16x256xi32> to vector<1x16x256xf32>
    %71 = arith.truncf %70 : vector<1x16x256xf32> to vector<1x16x256xbf16>
    %c0_39 = arith.constant 0 : index
    %72 = arith.index_cast %c1_i32 : i32 to index
    %c0_40 = arith.constant 0 : index
    %c0_41 = arith.constant 0 : index
    %73 = vector.load %arg7[%c0_39, %72, %c0_40, %c0_41] : memref<1x3x16x256xbf16, #tpu.memory_space<vmem>>, vector<1x1x16x256xbf16>
    %74 = vector.shape_cast %73 : vector<1x1x16x256xbf16> to vector<1x16x256xbf16>
    %75 = vector.shape_cast %71 : vector<1x16x256xbf16> to vector<1x1x16x256xbf16>
    tpu.vector_store %arg7[%c0_39, %72, %c0_40, %c0_41], %75 {strides = array<i32>} : memref<1x3x16x256xbf16, #tpu.memory_space<vmem>>, vector<1x1x16x256xbf16>,
    %cst_42 = arith.constant 0.000000e+00 : f32
    %76 = vector.broadcast %cst_42 : f32 to vector<1x16x256xf32>
    %77 = arith.select %68, %76, %53 : vector<1x16x256xi1>, vector<1x16x256xf32>
    %c2_i32 = arith.constant 2 : i32
    %c0_43 = arith.constant 0 : index
    %78 = arith.index_cast %c2_i32 : i32 to index
    %c0_44 = arith.constant 0 : index
    %c0_45 = arith.constant 0 : index
    %79 = vector.load %arg2[%c0_43, %78, %c0_44, %c0_45] : memref<1x3x16x256xf32, #tpu.memory_space<vmem>>, vector<1x1x16x256xf32>
    %80 = vector.shape_cast %79 : vector<1x1x16x256xf32> to vector<1x16x256xf32>
    %81 = arith.addi %7, %c2_i32 : i32
    %c8_i32_46 = arith.constant 8 : i32
    %82 = arith.cmpi slt, %81, %c8_i32_46 : i32
    %cst_47 = arith.constant 0.000000e+00 : f32
    %83 = vector.broadcast %cst_47 : f32 to vector<1x16x256xf32>
    %84 = arith.select %82, %80, %83 : vector<1x16x256xf32>
    %85 = vector.broadcast %66 : vector<1x1x1xf32> to vector<1x16x256xf32>
    %86 = arith.mulf %77, %85 : vector<1x16x256xf32>
    %87 = arith.addf %86, %84 : vector<1x16x256xf32>
    %cst_48 = arith.constant dense<0.000000e+00> : vector<1x16xf32>
    %88 = vector.multi_reduction <add>, %87, %cst_48 [2] : vector<1x16x256xf32> to vector<1x16xf32>
    %cst_49 = arith.constant dense<0.000000e+00> : vector<1x4xf32>
    %89 = tpu.matmul %88, %3, %cst_49 {dimension_numbers = #tpu.dot_dimension_numbers<[1], [0], [0], [1], [0, 0, 1, 1], [], []>} : vector<1x16xf32>, vector<16x4xf32>, vector<1x4xf32> -> vector<1x4xf32>
    %90 = arith.addf %89, %4 : vector<1x4xf32>
    %cst_50 = arith.constant 0.000000e+00 : f32
    %91 = vector.broadcast %cst_50 : f32 to vector<1x4xf32>
    %92 = arith.maximumf %90, %91 : vector<1x4xf32>
    %cst_51 = arith.constant dense<0.000000e+00> : vector<1x1xf32>
    %93 = tpu.matmul %92, %5, %cst_51 {dimension_numbers = #tpu.dot_dimension_numbers<[1], [0], [0], [1], [0, 0, 1, 1], [], []>} : vector<1x4xf32>, vector<4x1xf32>, vector<1x1xf32> -> vector<1x1xf32>
    %94 = arith.addf %93, %6 : vector<1x1xf32>
    %95 = arith.negf %94 : vector<1x1xf32>
    %96 = math.exp %95 : vector<1x1xf32>
    %cst_52 = arith.constant 1.000000e+00 : f32
    %97 = vector.broadcast %cst_52 : f32 to vector<1x1xf32>
    %98 = arith.addf %97, %96 : vector<1x1xf32>
    %99 = arith.divf %97, %98 : vector<1x1xf32>
    %100 = vector.shape_cast %99 : vector<1x1xf32> to vector<1x1x1xf32>
    %cst_53 = arith.constant 1.000000e+00 : f32
    %101 = vector.broadcast %cst_53 : f32 to vector<1x16x256xf32>
    %102 = arith.cmpf ogt, %87, %101 : vector<1x16x256xf32>
    %103 = arith.extui %102 : vector<1x16x256xi1> to vector<1x16x256xi32>
    %104 = arith.sitofp %103 : vector<1x16x256xi32> to vector<1x16x256xf32>
    %105 = arith.truncf %104 : vector<1x16x256xf32> to vector<1x16x256xbf16>
    %c0_54 = arith.constant 0 : index
    %106 = arith.index_cast %c2_i32 : i32 to index
    %c0_55 = arith.constant 0 : index
    %c0_56 = arith.constant 0 : index
    %107 = vector.load %arg7[%c0_54, %106, %c0_55, %c0_56] : memref<1x3x16x256xbf16, #tpu.memory_space<vmem>>, vector<1x1x16x256xbf16>
    %108 = vector.shape_cast %107 : vector<1x1x16x256xbf16> to vector<1x16x256xbf16>
    %109 = vector.shape_cast %105 : vector<1x16x256xbf16> to vector<1x1x16x256xbf16>
    tpu.vector_store %arg7[%c0_54, %106, %c0_55, %c0_56], %109 {strides = array<i32>} : memref<1x3x16x256xbf16, #tpu.memory_space<vmem>>, vector<1x1x16x256xbf16>,
    %cst_57 = arith.constant 0.000000e+00 : f32
    %110 = vector.broadcast %cst_57 : f32 to vector<1x16x256xf32>
    %111 = arith.select %102, %110, %87 : vector<1x16x256xi1>, vector<1x16x256xf32>
    %c3_i32_58 = arith.constant 3 : i32
    %c0_59 = arith.constant 0 : index
    %c0_60 = arith.constant 0 : index
    %c0_61 = arith.constant 0 : index
    %112 = vector.load %arg8[%c0_59, %c0_60, %c0_61] : memref<1x16x256xf32, #tpu.memory_space<vmem>>, vector<1x16x256xf32>
    tpu.vector_store %arg8[%c0_59, %c0_60, %c0_61], %111 {strides = array<i32>} : memref<1x16x256xf32, #tpu.memory_space<vmem>>, vector<1x16x256xf32>,
    %c0_62 = arith.constant 0 : index
    %c0_63 = arith.constant 0 : index
    %c0_64 = arith.constant 0 : index
    %113 = vector.load %arg9[%c0_62, %c0_63, %c0_64] : memref<1x1x1xf32, #tpu.memory_space<vmem>>, vector<1x1x1xf32>
    tpu.vector_store %arg9[%c0_62, %c0_63, %c0_64], %100 {strides = array<i32>} : memref<1x1x1xf32, #tpu.memory_space<vmem>>, vector<1x1x1xf32>,
    return
  }
  func.func @transform_0(%arg0: i32, %arg1: i32) -> (i32, i32, i32, i32) {
    %c0_i32 = arith.constant 0 : i32
    %c0_i32_0 = arith.constant 0 : i32
    %c0_i32_1 = arith.constant 0 : i32
    return %arg0, %arg1, %c0_i32, %c0_i32_0 : i32, i32, i32, i32
  }
  func.func @transform_1(%arg0: i32, %arg1: i32) -> (i32, i32) {
    %c0_i32 = arith.constant 0 : i32
    %c0_i32_0 = arith.constant 0 : i32
    %c0_i32_1 = arith.constant 0 : i32
    return %c0_i32, %c0_i32_0 : i32, i32
  }
  func.func @transform_2(%arg0: i32, %arg1: i32) -> (i32, i32) {
    %c0_i32 = arith.constant 0 : i32
    %c0_i32_0 = arith.constant 0 : i32
    %c0_i32_1 = arith.constant 0 : i32
    return %c0_i32, %c0_i32_0 : i32, i32
  }
  func.func @transform_3(%arg0: i32, %arg1: i32) -> (i32, i32) {
    %c0_i32 = arith.constant 0 : i32
    %c0_i32_0 = arith.constant 0 : i32
    %c0_i32_1 = arith.constant 0 : i32
    return %c0_i32, %c0_i32_0 : i32, i32
  }
  func.func @transform_4(%arg0: i32, %arg1: i32) -> (i32, i32) {
    %c0_i32 = arith.constant 0 : i32
    %c0_i32_0 = arith.constant 0 : i32
    %c0_i32_1 = arith.constant 0 : i32
    return %c0_i32, %c0_i32_0 : i32, i32
  }
  func.func @transform_5(%arg0: i32, %arg1: i32) -> (i32, i32, i32, i32) {
    %c0_i32 = arith.constant 0 : i32
    %c0_i32_0 = arith.constant 0 : i32
    %c0_i32_1 = arith.constant 0 : i32
    return %arg0, %arg1, %c0_i32, %c0_i32_0 : i32, i32, i32, i32
  }
}

</mosaic_0001>

<llo_original>
// kernel: tpu_custom_call.1
$region0: #{tpu_custom_call.1}
  #allocation0 [shape = 'u32[]', space=smem, size = 0x4, offset = 0x4, fixed_abs, tag = 'smem constant byte address 0x4 - core index']
  #allocation1 [shape = 'u32[72,128]{1,0:T(1,128)}', space=vmem, size = 0x9000, scoped, tag = 'internal scratch']
  #allocation2 [shape = 'f32[1,16,256]{2,1,0:T(8,128)}', space=vmem, size = 0x4000, scoped, tag = 'scratch operand']
  #allocation3 [shape = 'f32[1,1,1]{2,1,0:T(1,128)}', space=vmem, size = 0x200, scoped, tag = 'scratch operand']
  #allocation4 [shape = 'f32[1,1]{1,0:T(1,128)S(1)}', space=vmem, size = 0x200, scoped, tag = 'scoped memory for tpu_custom_call.1']
  %s0 = inlined_call_operand.hbm [shape: f32[2,8,16,256], index: 0, kind: input, shape index: {}]
  %s1 = inlined_call_operand.vmem [shape: f32[16,4], index: 1, kind: input, shape index: {}]
  %s2 = inlined_call_operand.vmem [shape: f32[1,4], index: 2, kind: input, shape index: {}]
  %s3 = inlined_call_operand.vmem [shape: f32[4,1], index: 3, kind: input, shape index: {}]
  %s4 = inlined_call_operand.<no memory space> [shape: f32[1,1], index: 4, kind: input, shape index: {}]
  %s5 = inlined_call_operand.hbm [shape: bf16[2,8,16,256], index: 5, kind: output, shape index: {}]
  %s6 = sld [smem:[#allocation0]]
  $region61: #{tpu_custom_call.1} parent=0
    _
  %s8 = ssub.s32 1, %s6
  %s9 = scalar_select 0, %s8, %s6
  %v10 = vstv %s4
  %11 = vst [vmem:[#allocation4] sm:$0x1] %v10
  $region1: #{tpu_custom_call.1} parent=0
    #allocation5 [shape = 'u8[98304]{0}', space=vmem, size = 0x18000, scoped, tag = 'input window, operand 0']
    #allocation6 [shape = 's32[2]{0}', space=sflag, size = 0x8, scoped, tag = 'scoped memory for tpu_custom_call.1']
    #allocation7 [shape = 's32[2]{0}', space=sflag, size = 0x8, scoped, tag = 'scoped memory for tpu_custom_call.1']
    #allocation8 [shape = 'u8[49152]{0}', space=vmem, size = 0xc000, scoped, tag = 'output window, operand 0']
    %12 = vsyncpa [#allocation6], 0
    %s13 = scalar_lea.sflag [#allocation6], 1
    %14 = vsyncpa %s13, 0
    %15 = vsyncpa [#allocation7], 0
    %s16 = scalar_lea.sflag [#allocation7], 1
    %17 = vsyncpa %s16, 0
    loop: start=0, step=1, limit=8
    $region2: #{tpu_custom_call.1} parent=1 // loop_pre_header
      _
    $region3: #{tpu_custom_call.1} parent=1 // loop_header
      %s19 = sphi 0, %s23
      %p20 = scmp.ge.s32.totalorder %s19, 8
      %s26 = sphi 0, %s38
      %s27 = sphi 0, %s34
      %s28 = sphi 0, %s26
      %s29 = sphi 0, %s27
      %s30 = sphi 0, %s28
      %s31 = sphi 0, %s29
      %s43 = sphi 0, %s45
      %s46 = sphi 0, %s43
      %s47 = sphi 0, %s46
      %s63 = sphi 0, %s47
      %s67 = sphi 0, %s67
      %s69 = sphi 0, %s67
      %s70 = sphi 0, %s69
      %s84 = sphi 0, %s70
      %s88 = sphi 0, %s88
      %s90 = sphi 0, %s88
      %s91 = sphi 0, %s90
      %s105 = sphi 0, %s91
      %s109 = sphi 0, %s109
      %s111 = sphi 0, %s109
      %s112 = sphi 0, %s111
      %s126 = sphi 0, %s112
      %s130 = sphi 0, %s130
      %s132 = sphi 0, %s130
      %s133 = sphi 0, %s132
      %s147 = sphi 0, %s133
      %s155 = sphi 0, %s157
      %s158 = sphi 0, %s155
      %s159 = sphi 0, %s158
      %s175 = sphi 0, %s159
    $region4: #{tpu_custom_call.1} parent=1 // loop_header_branch
      %22 = sbr.rel (%p20) target = $region8
    $region5: #{tpu_custom_call.1} parent=1 // loop_body
      %s24 = ssub.s32 %s19, 1
      %s25 = ssub.s32 %s19, 2
      %s32 = sadd.s32 1, %s27
      %p33 = scmp.ge.s32.totalorder %s32, 3
      %s34 = scalar_select %p33, 0, %s32
      %s35 = sadd.s32 1, %s26
      %s36 = scalar_select %p33, %s35, %s26
      %p37 = scmp.ge.s32.totalorder %s36, 2
      %s38 = scalar_select %p37, 0, %s36
      %s39 = ssub.s32 %s26, %s38
      %s40 = ssub.s32 %s27, %s34
      %s41 = sor.u32 %s39, %s40
      %p42 = scmp.eq.s32.totalorder %s41, 0
      %s44 = sadd.s32 %s43, 1
      %s45 = scalar_select %p42, %s43, %s44
      %p48 = pneg %p42
      %p49 = scmp.eq.s32.totalorder %s19, 5
      %p50 = por %p48, %p49
      %p51 = scmp.ne.s32.totalorder %s43, %s46
      %p52 = scmp.eq.s32.totalorder %s19, 0
      %p53 = por %p51, %p52
      %p54 = scmp.ne.s32.totalorder %s43, %s46
      %p55 = scmp.eq.s32.totalorder %s24, 5
      %p56 = por %p54, %p55
      %p57 = scmp.ne.s32.totalorder %s46, %s47
      %p58 = scmp.eq.s32.totalorder %s24, 0
      %p59 = por %p57, %p58
      %p60 = scmp.ne.s32.totalorder %s46, %s47
      %p61 = scmp.eq.s32.totalorder %s25, 5
      %p62 = por %p60, %p61
      %p64 = scmp.ne.s32.totalorder %s47, %s63
      %p65 = scmp.eq.s32.totalorder %s25, 0
      %p66 = por %p64, %p65
      %s68 = sadd.s32 %s67, 1
      %p71 = scmp.eq.s32.totalorder %s19, 5
      %p72 = scmp.ne.s32.totalorder %s67, %s69
      %p73 = scmp.eq.s32.totalorder %s19, 0
      %p74 = por %p72, %p73
      %p75 = scmp.ne.s32.totalorder %s67, %s69
      %p76 = scmp.eq.s32.totalorder %s24, 5
      %p77 = por %p75, %p76
      %p78 = scmp.ne.s32.totalorder %s69, %s70
      %p79 = scmp.eq.s32.totalorder %s24, 0
      %p80 = por %p78, %p79
      %p81 = scmp.ne.s32.totalorder %s69, %s70
      %p82 = scmp.eq.s32.totalorder %s25, 5
      %p83 = por %p81, %p82
      %p85 = scmp.ne.s32.totalorder %s70, %s84
      %p86 = scmp.eq.s32.totalorder %s25, 0
      %p87 = por %p85, %p86
      %s89 = sadd.s32 %s88, 1
      %p92 = scmp.eq.s32.totalorder %s19, 5
      %p93 = scmp.ne.s32.totalorder %s88, %s90
      %p94 = scmp.eq.s32.totalorder %s19, 0
      %p95 = por %p93, %p94
      %p96 = scmp.ne.s32.totalorder %s88, %s90
      %p97 = scmp.eq.s32.totalorder %s24, 5
      %p98 = por %p96, %p97
      %p99 = scmp.ne.s32.totalorder %s90, %s91
      %p100 = scmp.eq.s32.totalorder %s24, 0
      %p101 = por %p99, %p100
      %p102 = scmp.ne.s32.totalorder %s90, %s91
      %p103 = scmp.eq.s32.totalorder %s25, 5
      %p104 = por %p102, %p103
      %p106 = scmp.ne.s32.totalorder %s91, %s105
      %p107 = scmp.eq.s32.totalorder %s25, 0
      %p108 = por %p106, %p107
      %s110 = sadd.s32 %s109, 1
      %p113 = scmp.eq.s32.totalorder %s19, 5
      %p114 = scmp.ne.s32.totalorder %s109, %s111
      %p115 = scmp.eq.s32.totalorder %s19, 0
      %p116 = por %p114, %p115
      %p117 = scmp.ne.s32.totalorder %s109, %s111
      %p118 = scmp.eq.s32.totalorder %s24, 5
      %p119 = por %p117, %p118
      %p120 = scmp.ne.s32.totalorder %s111, %s112
      %p121 = scmp.eq.s32.totalorder %s24, 0
      %p122 = por %p120, %p121
      %p123 = scmp.ne.s32.totalorder %s111, %s112
      %p124 = scmp.eq.s32.totalorder %s25, 5
      %p125 = por %p123, %p124
      %p127 = scmp.ne.s32.totalorder %s112, %s126
      %p128 = scmp.eq.s32.totalorder %s25, 0
      %p129 = por %p127, %p128
      %s131 = sadd.s32 %s130, 1
      %p134 = scmp.eq.s32.totalorder %s19, 5
      %p135 = scmp.ne.s32.totalorder %s130, %s132
      %p136 = scmp.eq.s32.totalorder %s19, 0
      %p137 = por %p135, %p136
      %p138 = scmp.ne.s32.totalorder %s130, %s132
      %p139 = scmp.eq.s32.totalorder %s24, 5
      %p140 = por %p138, %p139
      %p141 = scmp.ne.s32.totalorder %s132, %s133
      %p142 = scmp.eq.s32.totalorder %s24, 0
      %p143 = por %p141, %p142
      %p144 = scmp.ne.s32.totalorder %s132, %s133
      %p145 = scmp.eq.s32.totalorder %s25, 5
      %p146 = por %p144, %p145
      %p148 = scmp.ne.s32.totalorder %s133, %s147
      %p149 = scmp.eq.s32.totalorder %s25, 0
      %p150 = por %p148, %p149
      %s151 = ssub.s32 %s26, %s38
      %s152 = ssub.s32 %s27, %s34
      %s153 = sor.u32 %s151, %s152
      %p154 = scmp.eq.s32.totalorder %s153, 0
      %s156 = sadd.s32 %s155, 1
      %s157 = scalar_select %p154, %s155, %s156
      %p160 = pneg %p154
      %p161 = scmp.eq.s32.totalorder %s19, 5
      %p162 = por %p160, %p161
      %p163 = scmp.ne.s32.totalorder %s155, %s158
      %p164 = scmp.eq.s32.totalorder %s19, 0
      %p165 = por %p163, %p164
      %p166 = scmp.ne.s32.totalorder %s155, %s158
      %p167 = scmp.eq.s32.totalorder %s24, 5
      %p168 = por %p166, %p167
      %p169 = scmp.ne.s32.totalorder %s158, %s159
      %p170 = scmp.eq.s32.totalorder %s24, 0
      %p171 = por %p169, %p170
      %p172 = scmp.ne.s32.totalorder %s158, %s159
      %p173 = scmp.eq.s32.totalorder %s25, 5
      %p174 = por %p172, %p173
      %p176 = scmp.ne.s32.totalorder %s159, %s175
      %p177 = scmp.eq.s32.totalorder %s25, 0
      %p178 = por %p176, %p177
      %p179 = scmp.le.s32.totalorder 1, %s19
      %p180 = scmp.lt.s32.totalorder %s19, 7
      %p181 = pnand %p179, %p180
      %p182 = pneg %p181
      // Predicated region
      $region9: #{tpu_custom_call.1} parent=5 // pred_check
        _
      $region10: #{tpu_custom_call.1} parent=5 // pred_check_branch
        %184 = sbr.rel (%p181) target = $region12
      $region11: #{tpu_custom_call.1} parent=5 // pred_region
        %s185 = ssub.s32 %s19, 1
        // Predicated region
        $region13: #{tpu_custom_call.1} parent=11 // pred_check
          %p186 = pneg %p80
        $region14: #{tpu_custom_call.1} parent=11 // pred_check_branch
          %188 = sbr.rel (%p186) target = $region16
        $region15: #{tpu_custom_call.1} parent=11 // pred_region
          _
        $region16: #{tpu_custom_call.1} parent=11 // pred_fallthru
          _
        // Predicated region
        $region17: #{tpu_custom_call.1} parent=11 // pred_check
          %p189 = pneg %p101
        $region18: #{tpu_custom_call.1} parent=11 // pred_check_branch
          %191 = sbr.rel (%p189) target = $region20
        $region19: #{tpu_custom_call.1} parent=11 // pred_region
          _
        $region20: #{tpu_custom_call.1} parent=11 // pred_fallthru
          _
        // Predicated region
        $region21: #{tpu_custom_call.1} parent=11 // pred_check
          %p192 = pneg %p122
        $region22: #{tpu_custom_call.1} parent=11 // pred_check_branch
          %194 = sbr.rel (%p192) target = $region24
        $region23: #{tpu_custom_call.1} parent=11 // pred_region
          _
        $region24: #{tpu_custom_call.1} parent=11 // pred_fallthru
          _
        // Predicated region
        $region25: #{tpu_custom_call.1} parent=11 // pred_check
          %p195 = pneg %p143
        $region26: #{tpu_custom_call.1} parent=11 // pred_check_branch
          %197 = sbr.rel (%p195) target = $region28
        $region27: #{tpu_custom_call.1} parent=11 // pred_region
          _
        $region28: #{tpu_custom_call.1} parent=11 // pred_fallthru
          _
      $region12: #{tpu_custom_call.1} parent=5 // pred_fallthru
        _
      %p198 = scmp.lt.s32.totalorder %s19, 6
      // Predicated region
      $region29: #{tpu_custom_call.1} parent=5 // pred_check
        %p199 = pneg %p198
      $region30: #{tpu_custom_call.1} parent=5 // pred_check_branch
        %201 = sbr.rel (%p199) target = $region32
      $region31: #{tpu_custom_call.1} parent=5 // pred_region
        // Predicated region
        $region33: #{tpu_custom_call.1} parent=31 // pred_check
          %p202 = pneg %p53
        $region34: #{tpu_custom_call.1} parent=31 // pred_check_branch
          %204 = sbr.rel (%p202) target = $region36
        $region35: #{tpu_custom_call.1} parent=31 // pred_region
          %s205 = sand.u32 %s43, 1
          %s206 = scalar_lea.sflag [#allocation6], %s205
          %s207 = sand.u32 %s43, 1
          %s208 = smul.addr %s207, 96
          %s209 = scalar_lea.vmem [#allocation5], %s208
          %s210 = smul.u32 3, %s27
          %s211 = ssub.s32 8, %s210
          %p212 = scmp.lt.s32.totalorder %s211, 3
          %s213 = scalar_select %p212, %s211, 3
          %s214 = smul.u32 8, %s213
          %s215 = smul.u32 %s214, 2
          %s216 = smul.u32 %s215, 2
          %s217 = ssub.s32 96, %s216
          %s218 = sshll.u32 %s217, 4
          %219 = vsyncadd %s206, %s218
          %p220 = scmp.ne.s32.totalorder 0, %s216
          %s221 = smul.addr %s210, 4
          %s222 = smul.addr %s26, 32
          %s223 = sadd.s32 %s221, %s222
          %s224 = smul.addr %s223, 8
          %s225 = scalar_lea.hbm %s0, %s224
          %s226 = smul.u32 %s213, 2
          %s227 = smul.u32 16, %s226
          %s228 = sshll.u32 %s225, 4
          %s229 = int_to_ptr.hbm [resolvable:$true] %s228
          %s230 = sshll.u32 %s209, 4
          %s231 = int_to_ptr.vmem [resolvable:$true] %s230
          %s232 = sshll.u32 %s227, 4
          %236 = dma.hbm_to_vmem [thread:$0]  (%p220), %s229, %s232, %s231, %s206, 256, 256, 16
        $region36: #{tpu_custom_call.1} parent=31 // pred_fallthru
          _
      $region32: #{tpu_custom_call.1} parent=5 // pred_fallthru
        _
      %p237 = scmp.le.s32.totalorder 1, %s19
      %p238 = scmp.lt.s32.totalorder %s19, 7
      %p239 = pnand %p237, %p238
      %p240 = pneg %p239
      // Predicated region
      $region37: #{tpu_custom_call.1} parent=5 // pred_check
        _
      $region38: #{tpu_custom_call.1} parent=5 // pred_check_branch
        %242 = sbr.rel (%p239) target = $region40
      $region39: #{tpu_custom_call.1} parent=5 // pred_region
        %s243 = ssub.s32 %s19, 1
        %s244 = sand.u32 %s46, 1
        %s245 = scalar_lea.sflag [#allocation6], %s244
        %s246 = sand.u32 %s46, 1
        %s247 = smul.addr %s246, 96
        %s248 = scalar_lea.vmem [#allocation5], %s247
        // Predicated region
        $region41: #{tpu_custom_call.1} parent=39 // pred_check
          %p249 = pneg %p59
        $region42: #{tpu_custom_call.1} parent=39 // pred_check_branch
          %251 = sbr.rel (%p249) target = $region44
        $region43: #{tpu_custom_call.1} parent=39 // pred_region
          %253 = dma.done %s245, 1536
        $region44: #{tpu_custom_call.1} parent=39 // pred_fallthru
          _
        %s254 = sand.u32 %s46, 1
        %s255 = scalar_lea.sflag [#allocation6], %s254
        %s256 = sand.u32 %s46, 1
        %s257 = smul.addr %s256, 96
        %s258 = scalar_lea.vmem [#allocation5], %s257
        %p259 = pneg %p59
        %p260 = pneg %p56
        %p261 = pneg %p80
        %p262 = pneg %p77
        %p263 = pneg %p101
        %p264 = pneg %p98
        %p265 = pneg %p122
        %p266 = pneg %p119
        %p267 = pneg %p143
        %p268 = pneg %p140
        %p269 = pneg %p171
        %p270 = pneg %p168
        %s271 = sand.u32 %s158, 1
        %s272 = scalar_lea.sflag [#allocation7], %s271
        %s273 = sand.u32 %s158, 1
        %s274 = smul.addr %s273, 48
        %s275 = scalar_lea.vmem [#allocation8], %s274
        %s276 = smul.u32 3, %s29
        %s277 = ssub.s32 8, %s276
        %p278 = scmp.lt.s32.totalorder %s277, 3
        %s279 = scalar_select %p278, %s277, 3
        %s280 = smul.u32 8, %s279
        %s281 = smul.u32 %s280, 2
        %s282 = smul.u32 %s281, 2
        %s283 = smul.u32 3, %s29
        %s284 = ssub.s32 8, %s283
        %p285 = scmp.lt.s32.totalorder %s284, 3
        %s286 = scalar_select %p285, %s284, 3
        %s287 = smul.u32 4, %s286
        %s288 = smul.u32 %s287, 2
        %s289 = smul.u32 %s288, 2
        %p290 = scmp.eq.s32.totalorder %s29, 0
        // Predicated region
        $region45: #{tpu_custom_call.1} parent=39 // pred_check
          %p291 = pneg %p290
        $region46: #{tpu_custom_call.1} parent=39 // pred_check_branch
          %293 = sbr.rel (%p291) target = $region48
        $region47: #{tpu_custom_call.1} parent=39 // pred_region
          %294 = vst [vmem:[#allocation2] sm:$0xff] 0.0
          %295 = vst [vmem:[#allocation2 + $0x8] sm:$0xff] 0.0
          %296 = vst [vmem:[#allocation2 + $0x10] sm:$0xff] 0.0
          %297 = vst [vmem:[#allocation2 + $0x18] sm:$0xff] 0.0
          %vm298 = vcmask 0
          %299 = vst.msk [vmem:[#allocation3] sm:$0x1] %vm298, 0.5
        $region48: #{tpu_custom_call.1} parent=39 // pred_fallthru
          _
        %v300 = vld [vmem:[%s1] sm:$0xff]
        %v301 = vld [vmem:[%s1 + $0x8] sm:$0xff]
        %v302 = vld [vmem:[%s2] sm:$0x1]
        %v303 = vld [vmem:[%s3] sm:$0xf]
        %v304 = vld [vmem:[#allocation4] sm:$0x1]
        %s305 = smul.u32 %s29, 3
        %v306 = vld [vmem:[#allocation2] sm:$0xff]
        %v307 = vld [vmem:[#allocation2 + $0x8] sm:$0xff]
        %v308 = vld [vmem:[#allocation2 + $0x10] sm:$0xff]
        %v309 = vld [vmem:[#allocation2 + $0x18] sm:$0xff]
        %v310 = vld [vmem:[#allocation3] sm:$0x1]
        %v311 = vld [vmem:[%s248] sm:$0xff]
        %v312 = vld [vmem:[%s248 + $0x8] sm:$0xff]
        %v313 = vld [vmem:[%s248 + $0x10] sm:$0xff]
        %v314 = vld [vmem:[%s248 + $0x18] sm:$0xff]
        %p315 = scmp.lt.s32.totalorder %s305, 8
        %s316 = scalar_select %p315, 1, 0
        %v317 = vstv %s316
        %vm318 = vcmp.eq.s32.totalorder %v317, 1
        %v319 = vsel %vm318, %v311, 0.0
        %v320 = vsel %vm318, %v312, 0.0
        %v321 = vsel %vm318, %v313, 0.0
        %v322 = vsel %vm318, %v314, 0.0
        %v324 = vperm.slane %v310, 0
        %325 = vset.pattern.permute.xlu0 0
        %326 = vperm.xlu0 %325, %v324
        %v327 = vpop.permute.xlu0 %326
        %v329 = vmul.f32 %v306, %v327
        %v330 = vmul.f32 %v307, %v327
        %v331 = vmul.f32 %v308, %v327
        %v332 = vmul.f32 %v309, %v327
        %v333 = vadd.f32 %v329, %v319
        %v334 = vadd.f32 %v330, %v320
        %v335 = vadd.f32 %v331, %v321
        %v336 = vadd.f32 %v332, %v322
        %v337 = vadd.f32 %v333, %v334
        %338 = vadd.xlane.f32.xlu0 %v337
        %v339 = vpop.xlane.xlu0 %338
        %v340 = vadd.f32 %v335, %v336
        %341 = vadd.xlane.f32.xlu0 %v340
        %v342 = vpop.xlane.xlu0 %341
        %v345 = vlaneseq
        %v346 = vand.u32 %v345, 127
        %v347 = vperm.slane %v339, %v346
        %v348 = vadd.s32 %v346, 4294967288
        %v349 = vperm.slane %v342, %v348
        %vm350 = vcmask 130112
        %v351 = vsel %vm350, %v349, %v347
        %vm352 = vcmask 130048
        %v353 = vsel %vm352, %v351, 0
        %355 = vmatpush.msra.mxu0 0.0
        %356 = vmatpush.msra.mxu0 0.0
        %357 = vmatpush.msra.mxu0 0.0
        %358 = vmatpush.msra.mxu0 0.0
        %359 = vmatpush.msra.mxu0 0.0
        %360 = vmatpush.msra.mxu0 0.0
        %361 = vmatpush.msra.mxu0 0.0
        %362 = vmatpush.msra.mxu0 0.0
        %363 = vmatpush.msra.mxu0 0.0
        %364 = vmatpush.msra.mxu0 0.0
        %365 = vmatpush.msra.mxu0 0.0
        %366 = vmatpush.msra.mxu0 0.0
        %367 = vmatpush.msra.mxu0 0.0
        %368 = vmatpush.msra.mxu0 0.0
        %369 = vmatpush.msra.mxu0 %v301
        %370 = vmatpush.msra.mxu0 %v300
        %371 = vmatmul.f32.gmra.mxu0 %v353
        %v372 = vpop.f32.mrf.mxu0
        %v373 = vadd.f32 %v302, %v372
        %374 = vdwg.mxu0
        %v375 = vmax.f32 %v373, 0.0
        %vm376 = vcmask 31744
        %v378 = vsel %vm376, %v375, 0
        %vm380 = vcmask 1043456
        %v382 = vsel %vm380, %v303, 0
        %384 = vmatpush.msra.mxu0 0.0
        %385 = vmatpush.msra.mxu0 0.0
        %386 = vmatpush.msra.mxu0 0.0
        %387 = vmatpush.msra.mxu0 0.0
        %388 = vmatpush.msra.mxu0 0.0
        %389 = vmatpush.msra.mxu0 0.0
        %390 = vmatpush.msra.mxu0 0.0
        %391 = vmatpush.msra.mxu0 0.0
        %392 = vmatpush.msra.mxu0 0.0
        %393 = vmatpush.msra.mxu0 0.0
        %394 = vmatpush.msra.mxu0 0.0
        %395 = vmatpush.msra.mxu0 0.0
        %396 = vmatpush.msra.mxu0 0.0
        %397 = vmatpush.msra.mxu0 0.0
        %398 = vmatpush.msra.mxu0 0.0
        %399 = vmatpush.msra.mxu0 %v382
        %400 = vmatmul.f32.gmra.mxu0 %v378
        %v401 = vpop.f32.mrf.mxu0
        %v402 = vadd.f32 %v304, %v401
        %403 = vdwg.mxu0
        %v404 = vxor.u32 %v402, 2147483648
        %v405 = vmul.f32 %v404, 1.442695
        %v406 = vpow.pop %v405
        %v407 = vadd.f32 %v406, 1.0
        %v408 = vrcp.pop %v407
        %v409 = vmul.f32 %v407, %v408
        %v410 = vsub.f32 1.0, %v409
        %v411 = vmul.f32 %v408, %v410
        %v412 = vadd.f32 %v408, %v411
        %vm413 = vweird.f32 %v407
        %vm414 = vweird.f32 %v408
        %vm415 = vmor %vm413, %vm414
        %v416 = vsel %vm415, %v408, %v412
        %v417 = vand.u32 2147483647, %v407
        %vm418 = vcmp.eq.f32.partialorder %v417, 8.507059e+37
        %v419 = vand.u32 %v407, 2147483648
        %v420 = vor.u32 1.1754944e-38, %v419
        %v421 = vsel %vm418, %v420, %v416
        %v422 = vmul.f32 1.0, %v421
        %vm423 = vcmp.gt.f32.partialorder %v333, 1.0
        %vm424 = vcmp.gt.f32.partialorder %v334, 1.0
        %vm425 = vcmp.gt.f32.partialorder %v335, 1.0
        %vm426 = vcmp.gt.f32.partialorder %v336, 1.0
        %v427 = vsel %vm423, 1, 0
        %v428 = vsel %vm424, 1, 0
        %v429 = vsel %vm425, 1, 0
        %v430 = vsel %vm426, 1, 0
        %v431 = vcvt.s32.f32 %v427
        %v432 = vcvt.s32.f32 %v428
        %v433 = vcvt.s32.f32 %v429
        %v434 = vcvt.s32.f32 %v430
        %v435 = vpack.c.bf16 %v432, %v431
        %v436 = vpack.c.bf16 %v434, %v433
        %437 = vst [vmem:[%s275] sm:$0xff] %v435
        %438 = vst [vmem:[%s275 + $0x8] sm:$0xff] %v436
        %v439 = vsel %vm423, 0.0, %v333
        %v440 = vsel %vm424, 0.0, %v334
        %v441 = vsel %vm425, 0.0, %v335
        %v442 = vsel %vm426, 0.0, %v336
        %s443 = scalar_lea.vmem %s248, 32 [#allocation5]
        %v444 = vld [vmem:[%s443] sm:$0xff]
        %v445 = vld [vmem:[%s443 + $0x8] sm:$0xff]
        %v446 = vld [vmem:[%s443 + $0x10] sm:$0xff]
        %v447 = vld [vmem:[%s443 + $0x18] sm:$0xff]
        %s448 = sadd.s32 %s305, 1
        %p449 = scmp.lt.s32.totalorder %s448, 8
        %s450 = scalar_select %p449, 1, 0
        %v451 = vstv %s450
        %vm452 = vcmp.eq.s32.totalorder %v451, 1
        %v453 = vsel %vm452, %v444, 0.0
        %v454 = vsel %vm452, %v445, 0.0
        %v455 = vsel %vm452, %v446, 0.0
        %v456 = vsel %vm452, %v447, 0.0
        %s458 = vtos %v422
        %v459 = vstv %s458
        %v461 = vmul.f32 %v439, %v459
        %v462 = vmul.f32 %v440, %v459
        %v463 = vmul.f32 %v441, %v459
        %v464 = vmul.f32 %v442, %v459
        %v465 = vadd.f32 %v461, %v453
        %v466 = vadd.f32 %v462, %v454
        %v467 = vadd.f32 %v463, %v455
        %v468 = vadd.f32 %v464, %v456
        %v469 = vadd.f32 %v465, %v466
        %470 = vadd.xlane.f32.xlu0 %v469
        %v471 = vpop.xlane.xlu0 %470
        %v472 = vadd.f32 %v467, %v468
        %473 = vadd.xlane.f32.xlu0 %v472
        %v474 = vpop.xlane.xlu0 %473
        %v477 = vperm.slane %v471, %v346
        %v478 = vperm.slane %v474, %v348
        %v479 = vsel %vm350, %v478, %v477
        %v480 = vsel %vm352, %v479, 0
        %482 = vmatpush.msra.mxu0 0.0
        %483 = vmatpush.msra.mxu0 0.0
        %484 = vmatpush.msra.mxu0 0.0
        %485 = vmatpush.msra.mxu0 0.0
        %486 = vmatpush.msra.mxu0 0.0
        %487 = vmatpush.msra.mxu0 0.0
        %488 = vmatpush.msra.mxu0 0.0
        %489 = vmatpush.msra.mxu0 0.0
        %490 = vmatpush.msra.mxu0 0.0
        %491 = vmatpush.msra.mxu0 0.0
        %492 = vmatpush.msra.mxu0 0.0
        %493 = vmatpush.msra.mxu0 0.0
        %494 = vmatpush.msra.mxu0 0.0
        %495 = vmatpush.msra.mxu0 0.0
        %496 = vmatpush.msra.mxu0 %v301
        %497 = vmatpush.msra.mxu0 %v300
        %498 = vmatmul.f32.gmra.mxu0 %v480
        %v499 = vpop.f32.mrf.mxu0
        %v500 = vadd.f32 %v302, %v499
        %501 = vdwg.mxu0
        %v502 = vmax.f32 %v500, 0.0
        %v504 = vsel %vm376, %v502, 0
        %506 = vmatpush.msra.mxu0 0.0
        %507 = vmatpush.msra.mxu0 0.0
        %508 = vmatpush.msra.mxu0 0.0
        %509 = vmatpush.msra.mxu0 0.0
        %510 = vmatpush.msra.mxu0 0.0
        %511 = vmatpush.msra.mxu0 0.0
        %512 = vmatpush.msra.mxu0 0.0
        %513 = vmatpush.msra.mxu0 0.0
        %514 = vmatpush.msra.mxu0 0.0
        %515 = vmatpush.msra.mxu0 0.0
        %516 = vmatpush.msra.mxu0 0.0
        %517 = vmatpush.msra.mxu0 0.0
        %518 = vmatpush.msra.mxu0 0.0
        %519 = vmatpush.msra.mxu0 0.0
        %520 = vmatpush.msra.mxu0 0.0
        %521 = vmatpush.msra.mxu0 %v382
        %522 = vmatmul.f32.gmra.mxu0 %v504
        %v523 = vpop.f32.mrf.mxu0
        %v524 = vadd.f32 %v304, %v523
        %525 = vdwg.mxu0
        %v526 = vxor.u32 %v524, 2147483648
        %v527 = vmul.f32 %v526, 1.442695
        %v528 = vpow.pop %v527
        %v529 = vadd.f32 %v528, 1.0
        %v530 = vrcp.pop %v529
        %v531 = vmul.f32 %v529, %v530
        %v532 = vsub.f32 1.0, %v531
        %v533 = vmul.f32 %v530, %v532
        %v534 = vadd.f32 %v530, %v533
        %vm535 = vweird.f32 %v529
        %vm536 = vweird.f32 %v530
        %vm537 = vmor %vm535, %vm536
        %v538 = vsel %vm537, %v530, %v534
        %v539 = vand.u32 2147483647, %v529
        %vm540 = vcmp.eq.f32.partialorder %v539, 8.507059e+37
        %v541 = vand.u32 %v529, 2147483648
        %v542 = vor.u32 1.1754944e-38, %v541
        %v543 = vsel %vm540, %v542, %v538
        %v544 = vmul.f32 1.0, %v543
        %vm545 = vcmp.gt.f32.partialorder %v465, 1.0
        %vm546 = vcmp.gt.f32.partialorder %v466, 1.0
        %vm547 = vcmp.gt.f32.partialorder %v467, 1.0
        %vm548 = vcmp.gt.f32.partialorder %v468, 1.0
        %v549 = vsel %vm545, 1, 0
        %v550 = vsel %vm546, 1, 0
        %v551 = vsel %vm547, 1, 0
        %v552 = vsel %vm548, 1, 0
        %v553 = vcvt.s32.f32 %v549
        %v554 = vcvt.s32.f32 %v550
        %v555 = vcvt.s32.f32 %v551
        %v556 = vcvt.s32.f32 %v552
        %v557 = vpack.c.bf16 %v554, %v553
        %v558 = vpack.c.bf16 %v556, %v555
        %s559 = scalar_lea.vmem %s275, 16 [#allocation8]
        %560 = vst [vmem:[%s559] sm:$0xff] %v557
        %561 = vst [vmem:[%s559 + $0x8] sm:$0xff] %v558
        %v562 = vsel %vm545, 0.0, %v465
        %v563 = vsel %vm546, 0.0, %v466
        %v564 = vsel %vm547, 0.0, %v467
        %v565 = vsel %vm548, 0.0, %v468
        %s566 = scalar_lea.vmem %s248, 64 [#allocation5]
        %v567 = vld [vmem:[%s566] sm:$0xff]
        %v568 = vld [vmem:[%s566 + $0x8] sm:$0xff]
        %v569 = vld [vmem:[%s566 + $0x10] sm:$0xff]
        %v570 = vld [vmem:[%s566 + $0x18] sm:$0xff]
        %s571 = sadd.s32 %s305, 2
        %p572 = scmp.lt.s32.totalorder %s571, 8
        %s573 = scalar_select %p572, 1, 0
        %v574 = vstv %s573
        %vm575 = vcmp.eq.s32.totalorder %v574, 1
        %v576 = vsel %vm575, %v567, 0.0
        %v577 = vsel %vm575, %v568, 0.0
        %v578 = vsel %vm575, %v569, 0.0
        %v579 = vsel %vm575, %v570, 0.0
        %s581 = vtos %v544
        %v582 = vstv %s581
        %v584 = vmul.f32 %v562, %v582
        %v585 = vmul.f32 %v563, %v582
        %v586 = vmul.f32 %v564, %v582
        %v587 = vmul.f32 %v565, %v582
        %v588 = vadd.f32 %v584, %v576
        %v589 = vadd.f32 %v585, %v577
        %v590 = vadd.f32 %v586, %v578
        %v591 = vadd.f32 %v587, %v579
        %v592 = vadd.f32 %v588, %v589
        %593 = vadd.xlane.f32.xlu0 %v592
        %v594 = vpop.xlane.xlu0 %593
        %v595 = vadd.f32 %v590, %v591
        %596 = vadd.xlane.f32.xlu0 %v595
        %v597 = vpop.xlane.xlu0 %596
        %v600 = vperm.slane %v594, %v346
        %v601 = vperm.slane %v597, %v348
        %v602 = vsel %vm350, %v601, %v600
        %v603 = vsel %vm352, %v602, 0
        %605 = vmatpush.msra.mxu0 0.0
        %606 = vmatpush.msra.mxu0 0.0
        %607 = vmatpush.msra.mxu0 0.0
        %608 = vmatpush.msra.mxu0 0.0
        %609 = vmatpush.msra.mxu0 0.0
        %610 = vmatpush.msra.mxu0 0.0
        %611 = vmatpush.msra.mxu0 0.0
        %612 = vmatpush.msra.mxu0 0.0
        %613 = vmatpush.msra.mxu0 0.0
        %614 = vmatpush.msra.mxu0 0.0
        %615 = vmatpush.msra.mxu0 0.0
        %616 = vmatpush.msra.mxu0 0.0
        %617 = vmatpush.msra.mxu0 0.0
        %618 = vmatpush.msra.mxu0 0.0
        %619 = vmatpush.msra.mxu0 %v301
        %620 = vmatpush.msra.mxu0 %v300
        %621 = vmatmul.f32.gmra.mxu0 %v603
        %v622 = vpop.f32.mrf.mxu0
        %v623 = vadd.f32 %v302, %v622
        %624 = vdwg.mxu0
        %v625 = vmax.f32 %v623, 0.0
        %v627 = vsel %vm376, %v625, 0
        %629 = vmatpush.msra.mxu0 0.0
        %630 = vmatpush.msra.mxu0 0.0
        %631 = vmatpush.msra.mxu0 0.0
        %632 = vmatpush.msra.mxu0 0.0
        %633 = vmatpush.msra.mxu0 0.0
        %634 = vmatpush.msra.mxu0 0.0
        %635 = vmatpush.msra.mxu0 0.0
        %636 = vmatpush.msra.mxu0 0.0
        %637 = vmatpush.msra.mxu0 0.0
        %638 = vmatpush.msra.mxu0 0.0
        %639 = vmatpush.msra.mxu0 0.0
        %640 = vmatpush.msra.mxu0 0.0
        %641 = vmatpush.msra.mxu0 0.0
        %642 = vmatpush.msra.mxu0 0.0
        %643 = vmatpush.msra.mxu0 0.0
        %644 = vmatpush.msra.mxu0 %v382
        %645 = vmatmul.f32.gmra.mxu0 %v627
        %v646 = vpop.f32.mrf.mxu0
        %v647 = vadd.f32 %v304, %v646
        %648 = vdwg.mxu0
        %v649 = vxor.u32 %v647, 2147483648
        %v650 = vmul.f32 %v649, 1.442695
        %v651 = vpow.pop %v650
        %v652 = vadd.f32 %v651, 1.0
        %v653 = vrcp.pop %v652
        %v654 = vmul.f32 %v652, %v653
        %v655 = vsub.f32 1.0, %v654
        %v656 = vmul.f32 %v653, %v655
        %v657 = vadd.f32 %v653, %v656
        %vm658 = vweird.f32 %v652
        %vm659 = vweird.f32 %v653
        %vm660 = vmor %vm658, %vm659
        %v661 = vsel %vm660, %v653, %v657
        %v662 = vand.u32 2147483647, %v652
        %vm663 = vcmp.eq.f32.partialorder %v662, 8.507059e+37
        %v664 = vand.u32 %v652, 2147483648
        %v665 = vor.u32 1.1754944e-38, %v664
        %v666 = vsel %vm663, %v665, %v661
        %v667 = vmul.f32 1.0, %v666
        %vm668 = vcmp.gt.f32.partialorder %v588, 1.0
        %vm669 = vcmp.gt.f32.partialorder %v589, 1.0
        %vm670 = vcmp.gt.f32.partialorder %v590, 1.0
        %vm671 = vcmp.gt.f32.partialorder %v591, 1.0
        %v672 = vsel %vm668, 1, 0
        %v673 = vsel %vm669, 1, 0
        %v674 = vsel %vm670, 1, 0
        %v675 = vsel %vm671, 1, 0
        %v676 = vcvt.s32.f32 %v672
        %v677 = vcvt.s32.f32 %v673
        %v678 = vcvt.s32.f32 %v674
        %v679 = vcvt.s32.f32 %v675
        %v680 = vpack.c.bf16 %v677, %v676
        %v681 = vpack.c.bf16 %v679, %v678
        %s682 = scalar_lea.vmem %s275, 32 [#allocation8]
        %683 = vst [vmem:[%s682] sm:$0xff] %v680
        %684 = vst [vmem:[%s682 + $0x8] sm:$0xff] %v681
        %v685 = vsel %vm668, 0.0, %v588
        %v686 = vsel %vm669, 0.0, %v589
        %v687 = vsel %vm670, 0.0, %v590
        %v688 = vsel %vm671, 0.0, %v591
        %689 = vst [vmem:[#allocation2] sm:$0xff] %v685
        %690 = vst [vmem:[#allocation2 + $0x8] sm:$0xff] %v686
        %691 = vst [vmem:[#allocation2 + $0x10] sm:$0xff] %v687
        %692 = vst [vmem:[#allocation2 + $0x18] sm:$0xff] %v688
        %vm693 = vcmask 0
        %694 = vst.msk [vmem:[#allocation3] sm:$0x1] %vm693, %v667
        %s695 = sand.u32 %s158, 1
        %s696 = scalar_lea.sflag [#allocation7], %s695
        %s697 = sand.u32 %s158, 1
        %s698 = smul.addr %s697, 48
        %s699 = scalar_lea.vmem [#allocation8], %s698
        // Predicated region
        $region49: #{tpu_custom_call.1} parent=39 // pred_check
          %p700 = pneg %p168
        $region50: #{tpu_custom_call.1} parent=39 // pred_check_branch
          %702 = sbr.rel (%p700) target = $region52
        $region51: #{tpu_custom_call.1} parent=39 // pred_region
          %s703 = smul.u32 3, %s29
          %s704 = ssub.s32 8, %s703
          %p705 = scmp.lt.s32.totalorder %s704, 3
          %s706 = scalar_select %p705, %s704, 3
          %s707 = smul.u32 4, %s706
          %s708 = smul.u32 %s707, 2
          %s709 = smul.u32 %s708, 2
          %s710 = ssub.s32 48, %s709
          %s711 = sshll.u32 %s710, 4
          %712 = vsyncadd %s696, %s711
          %p713 = scmp.ne.s32.totalorder 0, %s709
          %s714 = smul.addr %s703, 4
          %s715 = smul.addr %s28, 32
          %s716 = sadd.s32 %s714, %s715
          %s717 = smul.addr %s716, 4
          %s718 = scalar_lea.hbm %s5, %s717
          %s719 = smul.u32 %s706, 2
          %s720 = smul.u32 8, %s719
          %s721 = sshll.u32 %s699, 4
          %s722 = int_to_ptr.vmem [resolvable:$true] %s721
          %s723 = sshll.u32 %s718, 4
          %s724 = int_to_ptr.hbm [resolvable:$true] %s723
          %s725 = sshll.u32 %s720, 4
          %729 = dma.vmem_to_hbm [thread:$0]  (%p713), %s722, %s725, %s724, %s696, 128, 128, 8
        $region52: #{tpu_custom_call.1} parent=39 // pred_fallthru
          _
      $region40: #{tpu_custom_call.1} parent=5 // pred_fallthru
        _
      %p730 = scmp.le.s32.totalorder 2, %s19
      // Predicated region
      $region53: #{tpu_custom_call.1} parent=5 // pred_check
        %p731 = pneg %p730
      $region54: #{tpu_custom_call.1} parent=5 // pred_check_branch
        %733 = sbr.rel (%p731) target = $region56
      $region55: #{tpu_custom_call.1} parent=5 // pred_region
        %s734 = ssub.s32 %s19, 2
        // Predicated region
        $region57: #{tpu_custom_call.1} parent=55 // pred_check
          %p735 = pneg %p174
        $region58: #{tpu_custom_call.1} parent=55 // pred_check_branch
          %737 = sbr.rel (%p735) target = $region60
        $region59: #{tpu_custom_call.1} parent=55 // pred_region
          %s738 = sand.u32 %s159, 1
          %s739 = scalar_lea.sflag [#allocation7], %s738
          %s740 = sand.u32 %s159, 1
          %s741 = smul.addr %s740, 48
          %s742 = scalar_lea.vmem [#allocation8], %s741
          %744 = dma.done %s739, 768
        $region60: #{tpu_custom_call.1} parent=55 // pred_fallthru
          _
      $region56: #{tpu_custom_call.1} parent=5 // pred_fallthru
        _
    $region6: #{tpu_custom_call.1} parent=1 // loop_footer
      %s23 = sadd.s32 1, %s19
    $region7: #{tpu_custom_call.1} parent=1 // loop_footer_branch
      %18 = sbr.rel target = $region3
    $region8: #{tpu_custom_call.1} parent=1 // loop_exit
      _
    %745 = vsyncpa [#allocation6], 1
    %s746 = scalar_lea.sflag [#allocation6], 1
    %747 = vsyncpa %s746, 1
    %748 = vsyncpa [#allocation7], 1
    %s749 = scalar_lea.sflag [#allocation7], 1
    %750 = vsyncpa %s749, 1

</llo_original>
